<compile_context>
chip_gen: v7x
topology: tpu7x:2x2x1
jax: 0.10.0
libtpu: 0.0.40
codegen_flags: <defaults>
</compile_context>

<pallas_src>
import jax
import jax.numpy as jnp
from jax.experimental import pallas as pl
from jax.experimental.pallas import tpu as pltpu

_LANES = 128
_SUBLANES = 8
_DEFAULT_TILE_ROWS = 2048       # 2048 x 128 x f32 = 1 MiB per block buffer
_XLA_FALLBACK_N = 1 << 17       # below ~1e5 elems XLA fusion beats kernel launch


def _linear11_kernel(wb_ref, x_ref, o_ref):
    # wb_ref: (2,) f32 in SMEM -> [w, b].  x_ref / o_ref: (tile_rows, 128) VMEM tiles.
    w = wb_ref[0]
    b = wb_ref[1]
    # Single VPU mul+add per vreg; no per-iteration broadcast, no MXU.
    o_ref[...] = x_ref[...] * w + b


def _pick_tile_rows(rows, want):
    """Largest (8,128)-legal tile <= want; best-effort even grid for v7x megacore."""
    if rows <= want:
        return rows  # one block equal to the full array dims is always legal
    tile = max((want // _SUBLANES) * _SUBLANES, _SUBLANES)
    grid_n = pl.cdiv(rows, tile)
    if grid_n > 1 and grid_n % 2 == 1:
        # Nudge the tile down so the grid count is even: balances the two
        # TensorCores on v7x; harmless on single-TC v5e/v6e.
        tile2 = ((pl.cdiv(rows, grid_n + 1) + _SUBLANES - 1) // _SUBLANES) * _SUBLANES
        if tile2 >= _SUBLANES and pl.cdiv(rows, tile2) % 2 == 0:
            tile = tile2
    return tile


def _linear11_pallas(x_rows, wb, tile_rows):
    rows, lanes = x_rows.shape
    grid_n = pl.cdiv(rows, tile_rows)
    n_elems = rows * lanes
    return pl.pallas_call(
        _linear11_kernel,
        out_shape=jax.ShapeDtypeStruct((rows, lanes), x_rows.dtype),
        grid=(grid_n,),
        in_specs=[
            pl.BlockSpec(memory_space=pltpu.MemorySpace.SMEM),       # (2,) scalars
            pl.BlockSpec((tile_rows, lanes), lambda i: (i, 0)),
        ],
        out_specs=pl.BlockSpec((tile_rows, lanes), lambda i: (i, 0)),
        compiler_params=pltpu.CompilerParams(
            dimension_semantics=("parallel",),  # shard row axis across v7x's 2 TCs
        ),
        cost_estimate=pl.CostEstimate(
            flops=2 * n_elems,
            transcendentals=0,
            bytes_accessed=2 * n_elems * x_rows.dtype.itemsize + 8,
        ),
    )(wb, x_rows)


def my_linear_regression(x, w, b, *, tile_rows=_DEFAULT_TILE_ROWS, force_pallas=False):
    """y = x @ W^T + b for nn.Linear(1, 1).  x: (N, 1) f32, w: (1, 1), b: (1,) -> (N, 1)."""
    N, F = x.shape
    assert F == 1 and w.shape == (1, 1) and b.shape == (1,)
    w_s = w[0, 0]
    b_s = b[0]

    if not force_pallas and N < _XLA_FALLBACK_N:
        # Byte-sized problem: launch/DMA-descriptor overhead dominates any Pallas
        # variant; let XLA fuse the FMA into surrounding work.
        return x * w_s + b_s

    rows = N // _LANES
    if rows == 0:
        return x * w_s + b_s  # fewer than 128 elements: nothing to tile

    x_flat = x.reshape(-1)
    n_main = rows * _LANES
    wb = jnp.concatenate([w.reshape(-1), b.reshape(-1)]).astype(x.dtype)  # (2,) packed

    # Lane-dense view: (rows, 128) so every vreg uses all 128 lanes and stores are
    # unmasked vst.  When N % 128 == 0 this is just a reshape (no pad/slice HBM
    # round trips); otherwise only the <128-element tail takes the XLA path.
    tr = _pick_tile_rows(rows, tile_rows)
    x_main = x_flat[:n_main].reshape(rows, _LANES)
    y_main = _linear11_pallas(x_main, wb, tr).reshape(-1)

    if n_main == N:
        return y_main.reshape(N, 1)

    # TODO(synk): the concatenate rewrites the full output once; it only runs when
    # N is not a multiple of 128 (tail < 128 elements).
    y_tail = x_flat[n_main:] * w_s + b_s
    return jnp.concatenate([y_main, y_tail]).reshape(N, 1)


if __name__ == "__main__":
    key = jax.random.PRNGKey(0)
    kx, kw, kb = jax.random.split(key, 3)

    # nn.Linear(1, 1) init: U(-1/sqrt(in_features), 1/sqrt(in_features)) = U(-1, 1)
    w = jax.random.uniform(kw, (1, 1), dtype=jnp.float32, minval=-1.0, maxval=1.0)
    b = jax.random.uniform(kb, (1,), dtype=jnp.float32, minval=-1.0, maxval=1.0)

    # 1) Module-sized input (N = 100): wrapper intentionally takes the XLA fast path.
    x_small = jax.random.uniform(kx, (100, 1), dtype=jnp.float32)
    y_small = jax.block_until_ready(my_linear_regression(x_small, w, b))
    assert y_small.shape == (100, 1)
    assert jnp.allclose(y_small, x_small @ w.T + b, atol=1e-6), "small-N mismatch"

    # 2) Aligned case (N % 128 == 0): exercises the Pallas kernel, no tail, no copies.
    x_a = jax.random.uniform(kx, (4096, 1), dtype=jnp.float32)
    y_a = jax.block_until_ready(my_linear_regression(x_a, w, b, force_pallas=True))
    assert jnp.allclose(y_a, x_a @ w.T + b, atol=1e-6), "aligned Pallas mismatch"

    # 3) Ragged case: 4992 elements via the Pallas kernel + 8-element XLA tail.
    x_r = jax.random.uniform(kx, (5000, 1), dtype=jnp.float32)
    y_r = jax.block_until_ready(my_linear_regression(x_r, w, b, force_pallas=True))
    assert y_r.shape == (5000, 1)
    assert jnp.allclose(y_r, x_r @ w.T + b, atol=1e-6), "ragged Pallas mismatch"

    print("KERNEL_OK")
</pallas_src>

<mosaic_0001>
module attributes {stable_mosaic.version = 11 : i64} {
  func.func @_linear11_kernel(%arg0: i32, %arg1: memref<2xf32, #tpu.memory_space<smem>>, %arg2: memref<32x128xf32, #tpu.memory_space<vmem>>, %arg3: memref<32x128xf32, #tpu.memory_space<vmem>>) attributes {dimension_semantics = [#tpu.dimension_semantics<parallel>], iteration_bounds = array<i64: 1>, scalar_prefetch = 0 : i64, scratch_operands = 0 : i64, tpu.core_type = #tpu.core_type<tc>, window_params = [{transform_indices = @transform_0, window_bounds = array<i64: 2>}, {transform_indices = @transform_1, window_bounds = array<i64: 32, 128>}, {transform_indices = @transform_2, window_bounds = array<i64: 32, 128>}]} {
    %c0 = arith.constant 0 : index
    %0 = memref.load %arg1[%c0] : memref<2xf32, #tpu.memory_space<smem>>
    %c1 = arith.constant 1 : index
    %1 = memref.load %arg1[%c1] : memref<2xf32, #tpu.memory_space<smem>>
    %c0_0 = arith.constant 0 : index
    %c0_1 = arith.constant 0 : index
    %2 = vector.load %arg2[%c0_0, %c0_1] : memref<32x128xf32, #tpu.memory_space<vmem>>, vector<32x128xf32>
    %3 = vector.broadcast %0 : f32 to vector<32x128xf32>
    %4 = arith.mulf %2, %3 : vector<32x128xf32>
    %5 = vector.broadcast %1 : f32 to vector<32x128xf32>
    %6 = arith.addf %4, %5 : vector<32x128xf32>
    %c0_2 = arith.constant 0 : index
    %c0_3 = arith.constant 0 : index
    %7 = vector.load %arg3[%c0_2, %c0_3] : memref<32x128xf32, #tpu.memory_space<vmem>>, vector<32x128xf32>
    tpu.vector_store %arg3[%c0_2, %c0_3], %6 {strides = array<i32>} : memref<32x128xf32, #tpu.memory_space<vmem>>, vector<32x128xf32>,
    return
  }
  func.func @transform_0(%arg0: i32) -> i32 {
    %c0_i32 = arith.constant 0 : i32
    %c0_i32_0 = arith.constant 0 : i32
    return %c0_i32 : i32
  }
  func.func @transform_1(%arg0: i32) -> (i32, i32) {
    %c0_i32 = arith.constant 0 : i32
    %c0_i32_0 = arith.constant 0 : i32
    return %arg0, %c0_i32 : i32, i32
  }
  func.func @transform_2(%arg0: i32) -> (i32, i32) {
    %c0_i32 = arith.constant 0 : i32
    %c0_i32_0 = arith.constant 0 : i32
    return %arg0, %c0_i32 : i32, i32
  }
}

</mosaic_0001>

<llo_original>
// kernel: tpu_custom_call.1
$region0: #{tpu_custom_call.1}
  #allocation0 [shape = 'u32[]', space=smem, size = 0x4, offset = 0x4, fixed_abs, tag = 'smem constant byte address 0x4 - core index']
  #allocation1 [shape = 'u32[144,128]{1,0:T(1,128)}', space=vmem, size = 0x12000, scoped, tag = 'internal scratch']
  %s0 = inlined_call_operand.hbm [shape: f32[2], index: 0, kind: input, shape index: {}]
  %s1 = inlined_call_operand.hbm [shape: f32[32,128], index: 1, kind: input, shape index: {}]
  %s2 = inlined_call_operand.hbm [shape: f32[32,128], index: 2, kind: output, shape index: {}]
  %s3 = sld [smem:[#allocation0]]
  $region26: #{tpu_custom_call.1} parent=0
    _
  %s5 = ssub.s32 1, %s3
  %s6 = scalar_select 0, %s5, %s3
  $region1: #{tpu_custom_call.1} parent=0
    #allocation2 [shape = 'u8[512]{0}', space=smem, size = 0x200, scoped, tag = 'input window, operand 0, single buffered']
    #allocation3 [shape = 's32[1]{0}', space=sflag, size = 0x4, scoped, tag = 'scoped memory for tpu_custom_call.1']
    #allocation4 [shape = 's32[1]{0}', space=sflag, size = 0x4, scoped, tag = 'scoped memory for tpu_custom_call.1']
    #allocation5 [shape = 's32[1]{0}', space=sflag, size = 0x4, scoped, tag = 'scoped memory for tpu_custom_call.1']
    #allocation6 [shape = 'u8[16384]{0}', space=vmem, size = 0x4000, scoped, tag = 'input window, operand 1, single buffered']
    #allocation7 [shape = 'u8[16384]{0}', space=vmem, size = 0x4000, scoped, tag = 'output window, operand 0, single buffered']
    %7 = vsyncpa [#allocation5], 0
    %8 = vsyncpa [#allocation3], 0
    %9 = vsyncpa [#allocation4], 0
    // Predicated region
    $region2: #{tpu_custom_call.1} parent=1 // pred_check
      _
    $region3: #{tpu_custom_call.1} parent=1 // pred_check_branch
      %11 = sbr.rel (0) target = $region5
    $region4: #{tpu_custom_call.1} parent=1 // pred_region
      %s13 = ssub.s32 16, 16
      %14 = vsyncadd [#allocation5], %s13
      %17 = dma.hbm_to_smem %s0, 16, [#allocation2], [#allocation5]
    $region5: #{tpu_custom_call.1} parent=1 // pred_fallthru
      _
    // Predicated region
    $region6: #{tpu_custom_call.1} parent=1 // pred_check
      _
    $region7: #{tpu_custom_call.1} parent=1 // pred_check_branch
      %19 = sbr.rel (0) target = $region9
    $region8: #{tpu_custom_call.1} parent=1 // pred_region
      %s21 = ssub.s32 512, 512
      %22 = vsyncadd [#allocation3], %s21
      %s23 = sshll.u32 [#allocation6], 4
      %s24 = int_to_ptr.vmem [resolvable:$true] %s23
      %29 = dma.hbm_to_vmem [thread:$0]  %s1, 512, %s24, [#allocation3], 128, 128, 8
    $region9: #{tpu_custom_call.1} parent=1 // pred_fallthru
      _
    // Predicated region
    $region10: #{tpu_custom_call.1} parent=1 // pred_check
      _
    $region11: #{tpu_custom_call.1} parent=1 // pred_check_branch
      %31 = sbr.rel (0) target = $region13
    $region12: #{tpu_custom_call.1} parent=1 // pred_region
      %32 = dma.done [#allocation5], 16
    $region13: #{tpu_custom_call.1} parent=1 // pred_fallthru
      _
    // Predicated region
    $region14: #{tpu_custom_call.1} parent=1 // pred_check
      _
    $region15: #{tpu_custom_call.1} parent=1 // pred_check_branch
      %34 = sbr.rel (0) target = $region17
    $region16: #{tpu_custom_call.1} parent=1 // pred_region
      %35 = dma.done [#allocation3], 512
    $region17: #{tpu_custom_call.1} parent=1 // pred_fallthru
      _
    %36 = sfence
    %s37 = sld [smem:[#allocation2]]
    %s38 = sld [smem:[#allocation2 + $0x1]]
    %v39 = vld [vmem:[#allocation6] sm:$0xff]
    %v40 = vld [vmem:[#allocation6 + $0x8] sm:$0xff]
    %v41 = vld [vmem:[#allocation6 + $0x10] sm:$0xff]
    %v42 = vld [vmem:[#allocation6 + $0x18] sm:$0xff]
    %v43 = vstv %s37
    %v44 = vmul.f32 %v39, %v43
    %v45 = vmul.f32 %v40, %v43
    %v46 = vmul.f32 %v41, %v43
    %v47 = vmul.f32 %v42, %v43
    %v48 = vstv %s38
    %v49 = vadd.f32 %v44, %v48
    %v50 = vadd.f32 %v45, %v48
    %v51 = vadd.f32 %v46, %v48
    %v52 = vadd.f32 %v47, %v48
    %53 = vst [vmem:[#allocation7] sm:$0xff] %v49
    %54 = vst [vmem:[#allocation7 + $0x8] sm:$0xff] %v50
    %55 = vst [vmem:[#allocation7 + $0x10] sm:$0xff] %v51
    %56 = vst [vmem:[#allocation7 + $0x18] sm:$0xff] %v52
    // Predicated region
    $region18: #{tpu_custom_call.1} parent=1 // pred_check
      _
    $region19: #{tpu_custom_call.1} parent=1 // pred_check_branch
      %58 = sbr.rel (0) target = $region21
    $region20: #{tpu_custom_call.1} parent=1 // pred_region
      %s60 = ssub.s32 512, 512
      %61 = vsyncadd [#allocation4], %s60
      %s62 = sshll.u32 [#allocation7], 4
      %s63 = int_to_ptr.vmem [resolvable:$true] %s62
      %68 = dma.vmem_to_hbm [thread:$0]  %s63, 512, %s2, [#allocation4], 128, 128, 8
    $region21: #{tpu_custom_call.1} parent=1 // pred_fallthru
      _
    // Predicated region
    $region22: #{tpu_custom_call.1} parent=1 // pred_check
      _
    $region23: #{tpu_custom_call.1} parent=1 // pred_check_branch
      %70 = sbr.rel (0) target = $region25
    $region24: #{tpu_custom_call.1} parent=1 // pred_region
      %71 = dma.done [#allocation4], 512
    $region25: #{tpu_custom_call.1} parent=1 // pred_fallthru
      _
    %72 = vsyncpa [#allocation3], 1
    %73 = vsyncpa [#allocation4], 1
    %74 = vsyncpa [#allocation5], 1

</llo_original>
